<compile_context>
chip_gen: v6e
topology: v6e:2x2x1
jax: 0.10.0
libtpu: 0.0.40
codegen_flags: <defaults>
</compile_context>

<pallas_src>
import jax
import jax.numpy as jnp
import numpy as np
from jax import lax
from jax.experimental import pallas as pl
from jax.experimental.pallas import tpu as pltpu

REPEAT_STEPS = 24  # fixed by the module: "next 24 time steps"


# ----------------------------- kernel -----------------------------------------


def _tile_last_step_kernel(x_ref, o_ref):
    # x_ref: (tb, F)       last known timestep for this batch tile
    # o_ref: (tb, 24 * F)  that timestep tiled 24x along a single lane-dense axis
    o_ref[...] = jnp.tile(x_ref[...], (1, REPEAT_STEPS))


# ----------------------------- helpers -----------------------------------------


def _sublane_tile(dtype) -> int:
    """Minimum sublane multiple for this dtype (f32: 8, bf16: 16, int8/fp8: 32)."""
    itemsize = jnp.dtype(dtype).itemsize
    return {4: 8, 2: 16, 1: 32}.get(itemsize, 8)


def _round_up(x: int, m: int) -> int:
    return -(-x // m) * m


def _pick_batch_tile(batch: int, per_row_out_bytes: int, sublane: int,
                     target_block_bytes: int) -> int:
    """Largest batch tile whose output block stays ~<= target_block_bytes, aligned to
    the dtype sublane tile, and capped so the grid has >= 2 steps when B allows it
    (v7x has 2 TensorCores; a 1-step grid idles half the chip's DMA issue)."""
    tb = max(1, target_block_bytes // max(per_row_out_bytes, 1))
    if batch >= 2 * sublane:
        tb = min(tb, _round_up(-(-batch // 2), sublane))
    if tb >= batch:
        return batch
    return max(sublane, (tb // sublane) * sublane)


# ----------------------------- wrapper ------------------------------------------


def multi_step_baseline(x: jax.Array, label_index: int | None = None, *,
                        batch_tile: int | None = None,
                        target_block_bytes: int = 12 << 20) -> jax.Array:
    """Pallas implementation of MultiStepBaseline.forward. x: (B, T, F)."""
    B, T, F = x.shape
    itemsize = jnp.dtype(x.dtype).itemsize
    sublane = _sublane_tile(x.dtype)

    if label_index is not None:
        label_index = int(label_index)
        if not 0 <= label_index < F:
            raise ValueError(f"label_index {label_index} out of range for F={F}")
        # Output is only B*24 scalars: a pallas_call launch + per-step overhead dwarfs
        # the data movement and the 24-wide lane dim would force masked stores, so a
        # fused XLA broadcast is strictly faster (perf review).  Only the B scalars
        # actually used are read.
        # TODO(synk): revisit with a lane-dense Pallas path only if a profiler ever
        # shows this tiny broadcast failing to fuse at very large B.
        last = lax.slice(x, (0, T - 1, label_index), (B, T, label_index + 1))  # (B,1,1)
        return jnp.broadcast_to(last, (B, REPEAT_STEPS, 1))

    # Full-feature path: read only the last timestep (B*F elements), as a dense 2-D slab.
    last2d = lax.slice_in_dim(x, T - 1, T, axis=1).reshape(B, F)  # (B, F)

    if batch_tile is not None:
        tb = min(int(batch_tile), B)
        if tb < B:
            # Sublane-dim block must be a multiple of the dtype tile when tiling;
            # requests below that are silently bumped up (results stay correct).
            tb = max(sublane, (tb // sublane) * sublane)
    else:
        tb = _pick_batch_tile(B, REPEAT_STEPS * F * itemsize, sublane,
                              target_block_bytes)

    out_flat = pl.pallas_call(
        _tile_last_step_kernel,
        out_shape=jax.ShapeDtypeStruct((B, REPEAT_STEPS * F), x.dtype),
        grid=(pl.cdiv(B, tb),),
        # input block: (tb, F)        — trailing dim equals the full array dim
        in_specs=[pl.BlockSpec((tb, F), lambda b: (b, 0))],
        # output block: (tb, 24*F)    — lane-dense, unmasked full-width stores
        out_specs=pl.BlockSpec((tb, REPEAT_STEPS * F), lambda b: (b, 0)),
        compiler_params=pltpu.CompilerParams(
            dimension_semantics=("parallel",),
            vmem_limit_bytes=48 << 20),  # 2 x 12 MiB out bufs + input, < 64 MiB v7x VMEM
        cost_estimate=pl.CostEstimate(
            flops=0, transcendentals=0,
            bytes_accessed=B * F * itemsize + B * REPEAT_STEPS * F * itemsize),
    )(last2d)

    # Row-major contiguous -> metadata-only reshape back to (B, 24, F).
    return out_flat.reshape(B, REPEAT_STEPS, F)


# ----------------------------- verification ---------------------------------------


def _reference(x: np.ndarray, label_index: int | None) -> np.ndarray:
    if label_index is None:
        return np.repeat(x[:, -1:, :], REPEAT_STEPS, axis=1)
    return np.repeat(x[:, -1:, label_index:label_index + 1], REPEAT_STEPS, axis=1)


if __name__ == "__main__":
    key = jax.random.PRNGKey(0)

    # Small shapes consistent with the module: (batch, time, features)
    B, T, F = 2, 8, 32
    x = jax.random.normal(key, (B, T, F), dtype=jnp.float32)
    x_np = np.asarray(x)

    # Case 1: label_index is None -> (B, 24, F)  (Pallas path)
    out_all = jax.block_until_ready(multi_step_baseline(x, label_index=None))
    np.testing.assert_array_equal(np.asarray(out_all), _reference(x_np, None))
    assert out_all.shape == (B, REPEAT_STEPS, F)

    # Case 2: label_index = 3 -> (B, 24, 1)  (tiny output: XLA broadcast path)
    out_idx = jax.block_until_ready(multi_step_baseline(x, label_index=3))
    np.testing.assert_array_equal(np.asarray(out_idx), _reference(x_np, 3))
    assert out_idx.shape == (B, REPEAT_STEPS, 1)

    # Case 3: exercise the batch grid with a ragged last tile (B=20, tile=8 -> grid of 3)
    B2 = 20
    x2 = jax.random.normal(jax.random.PRNGKey(1), (B2, T, F), dtype=jnp.float32)
    out_grid = jax.block_until_ready(multi_step_baseline(x2, label_index=None,
                                                         batch_tile=8))
    np.testing.assert_array_equal(np.asarray(out_grid), _reference(np.asarray(x2), None))
    assert out_grid.shape == (B2, REPEAT_STEPS, F)

    # Case 4: bf16 exercises the dtype-dependent sublane alignment (16-row tiles)
    x3 = jax.random.normal(jax.random.PRNGKey(2), (B2, T, F), dtype=jnp.bfloat16)
    out_bf16 = jax.block_until_ready(multi_step_baseline(x3, label_index=None,
                                                         batch_tile=8))
    np.testing.assert_array_equal(np.asarray(out_bf16), _reference(np.asarray(x3), None))
    assert out_bf16.shape == (B2, REPEAT_STEPS, F)

    print("KERNEL_OK")
</pallas_src>

<mosaic_0001>
module attributes {stable_mosaic.version = 11 : i64} {
  func.func @_tile_last_step_kernel(%arg0: i32, %arg1: memref<2x32xf32, #tpu.memory_space<vmem>>, %arg2: memref<2x768xf32, #tpu.memory_space<vmem>>) attributes {dimension_semantics = [#tpu.dimension_semantics<parallel>], iteration_bounds = array<i64: 1>, scalar_prefetch = 0 : i64, scratch_operands = 0 : i64, tpu.core_type = #tpu.core_type<tc>, window_params = [{transform_indices = @transform_0, window_bounds = array<i64: 2, 32>}, {transform_indices = @transform_1, window_bounds = array<i64: 2, 768>}]} {
    %c0 = arith.constant 0 : index
    %c0_0 = arith.constant 0 : index
    %0 = vector.load %arg1[%c0, %c0_0] : memref<2x32xf32, #tpu.memory_space<vmem>>, vector<2x32xf32>
    %1 = tpu.concatenate %0, %0, %0, %0, %0, %0, %0, %0, %0, %0, %0, %0, %0, %0, %0, %0, %0, %0, %0, %0, %0, %0, %0, %0 in 1 : vector<2x32xf32>, vector<2x32xf32>, vector<2x32xf32>, vector<2x32xf32>, vector<2x32xf32>, vector<2x32xf32>, vector<2x32xf32>, vector<2x32xf32>, vector<2x32xf32>, vector<2x32xf32>, vector<2x32xf32>, vector<2x32xf32>, vector<2x32xf32>, vector<2x32xf32>, vector<2x32xf32>, vector<2x32xf32>, vector<2x32xf32>, vector<2x32xf32>, vector<2x32xf32>, vector<2x32xf32>, vector<2x32xf32>, vector<2x32xf32>, vector<2x32xf32>, vector<2x32xf32> -> vector<2x768xf32>
    %c0_1 = arith.constant 0 : index
    %c0_2 = arith.constant 0 : index
    %2 = vector.load %arg2[%c0_1, %c0_2] : memref<2x768xf32, #tpu.memory_space<vmem>>, vector<2x768xf32>
    tpu.vector_store %arg2[%c0_1, %c0_2], %1 {strides = array<i32>} : memref<2x768xf32, #tpu.memory_space<vmem>>, vector<2x768xf32>,
    return
  }
  func.func @transform_0(%arg0: i32) -> (i32, i32) {
    %c0_i32 = arith.constant 0 : i32
    %c0_i32_0 = arith.constant 0 : i32
    return %arg0, %c0_i32 : i32, i32
  }
  func.func @transform_1(%arg0: i32) -> (i32, i32) {
    %c0_i32 = arith.constant 0 : i32
    %c0_i32_0 = arith.constant 0 : i32
    return %arg0, %c0_i32 : i32, i32
  }
}

</mosaic_0001>

<llo_original>
// kernel: tpu_custom_call.1
$region0: #{tpu_custom_call.1}
  #allocation0 [shape = 'u32[]', space=smem, size = 0x4, offset = 0x4, fixed_abs, tag = 'smem constant byte address 0x4 - core index']
  #allocation1 [shape = 'u32[144,128]{1,0:T(1,128)}', space=vmem, size = 0x12000, scoped, tag = 'internal scratch']
  %s0 = inlined_call_operand.hbm [shape: f32[2,32], index: 0, kind: input, shape index: {}]
  %s1 = inlined_call_operand.hbm [shape: f32[2,768], index: 1, kind: output, shape index: {}]
  %s2 = sld [smem:[#allocation0]]
  $region18: #{tpu_custom_call.1} parent=0
    _
  %s4 = ssub.s32 1, %s2
  %s5 = scalar_select 0, %s4, %s2
  $region1: #{tpu_custom_call.1} parent=0
    #allocation2 [shape = 'u8[1024]{0}', space=vmem, size = 0x400, scoped, tag = 'input window, operand 0, single buffered']
    #allocation3 [shape = 's32[1]{0}', space=sflag, size = 0x4, scoped, tag = 'scoped memory for tpu_custom_call.1']
    #allocation4 [shape = 's32[1]{0}', space=sflag, size = 0x4, scoped, tag = 'scoped memory for tpu_custom_call.1']
    #allocation5 [shape = 'u8[6144]{0}', space=vmem, size = 0x1800, scoped, tag = 'output window, operand 0, single buffered']
    %6 = vsyncpa [#allocation3], 0
    %7 = vsyncpa [#allocation4], 0
    // Predicated region
    $region2: #{tpu_custom_call.1} parent=1 // pred_check
      _
    $region3: #{tpu_custom_call.1} parent=1 // pred_check_branch
      %9 = sbr.rel (0) target = $region5
    $region4: #{tpu_custom_call.1} parent=1 // pred_region
      %s11 = ssub.s32 32, 32
      %12 = vsyncadd [#allocation3], %s11
      %s14 = sshll.u32 [#allocation2], 4
      %s15 = int_to_ptr.vmem [resolvable:$true] %s14
      %17 = dma.hbm_to_vmem [thread:$0]  %s0, 32, %s15, [#allocation3]
    $region5: #{tpu_custom_call.1} parent=1 // pred_fallthru
      _
    // Predicated region
    $region6: #{tpu_custom_call.1} parent=1 // pred_check
      _
    $region7: #{tpu_custom_call.1} parent=1 // pred_check_branch
      %19 = sbr.rel (0) target = $region9
    $region8: #{tpu_custom_call.1} parent=1 // pred_region
      %20 = dma.done [#allocation3], 32
    $region9: #{tpu_custom_call.1} parent=1 // pred_fallthru
      _
    %v21 = vld [vmem:[#allocation2] sm:$0x3]
    %23 = vrot.lane.b32.xlu0 %v21, 32
    %v24 = vpop.permute.xlu0 %23
    %26 = vrot.lane.b32.xlu0 %v21, 64
    %v27 = vpop.permute.xlu0 %26
    %29 = vrot.lane.b32.xlu0 %v21, 96
    %v30 = vpop.permute.xlu0 %29
    %vm32 = vcmask 261120
    %v33 = vsel %vm32, %v21, %v24
    %vm34 = vcmask 523264
    %v35 = vsel %vm34, %v33, %v27
    %vm36 = vcmask 785408
    %v37 = vsel %vm36, %v35, %v30
    %v39 = vcombine.low %v37, %v37
    %v41 = vunpack.c.l.s4 1983009808
    %v42 = vunpack.c.0.s8 %v41
    %v43 = vlaneseq
    %v44 = vshrl.u32 %v43, 7
    %v45 = vsub.s32 %v42, %v44
    %v46 = vrot.slane %v39, %v45
    %v47 = vcombine.low %v46, %v46
    %50 = vst [vmem:[#allocation5] sm:$0xff] %v47
    %51 = vst [vmem:[#allocation5 + $0x8] sm:$0xf] %v46
    // Predicated region
    $region10: #{tpu_custom_call.1} parent=1 // pred_check
      _
    $region11: #{tpu_custom_call.1} parent=1 // pred_check_branch
      %53 = sbr.rel (0) target = $region13
    $region12: #{tpu_custom_call.1} parent=1 // pred_region
      %s55 = ssub.s32 192, 192
      %56 = vsyncadd [#allocation4], %s55
      %s58 = sshll.u32 [#allocation5], 4
      %s59 = int_to_ptr.vmem [resolvable:$true] %s58
      %61 = dma.vmem_to_hbm [thread:$0]  %s59, 192, %s1, [#allocation4]
    $region13: #{tpu_custom_call.1} parent=1 // pred_fallthru
      _
    // Predicated region
    $region14: #{tpu_custom_call.1} parent=1 // pred_check
      _
    $region15: #{tpu_custom_call.1} parent=1 // pred_check_branch
      %63 = sbr.rel (0) target = $region17
    $region16: #{tpu_custom_call.1} parent=1 // pred_region
      %64 = dma.done [#allocation4], 192
    $region17: #{tpu_custom_call.1} parent=1 // pred_fallthru
      _
    %65 = vsyncpa [#allocation3], 1
    %66 = vsyncpa [#allocation4], 1

</llo_original>
